<compile_context>
chip_gen: v7x
topology: tpu7x:2x2x1
jax: 0.10.0
libtpu: 0.0.40
codegen_flags: <defaults>
</compile_context>

<pallas_src>
import functools
import math

import jax
import jax.numpy as jnp
from jax import lax
from jax.experimental import pallas as pl
from jax.experimental.pallas import tpu as pltpu

# Module hyper-parameters (from Model.__init__)
CIN, COUT, KH, KW = 16, 128, 9, 9
PAD = 1
CLAMP_MIN = 0.2   # `min` in the PyTorch script
CLAMP_MAX = 0.9   # `max` in the PyTorch script

TARGET_TM = 1024  # target output-row-tile size (within the 512-2048 sweet spot)


def _round_up(a, b):
    return (a + b - 1) // b * b


def _conv_kernel(p_ref, w_ref, b_ref, o_ref, acc_ref, *, toh, ow_pad, tm):
    """Grid = (n, row_tile, kh).  One step = one kernel-row tap (K = KW*CIN)."""
    t = pl.program_id(1)
    kh = pl.program_id(2)

    @pl.when(kh == 0)
    def _init():
        acc_ref[...] = jnp.zeros_like(acc_ref)

    # Rows [ (t*TOH + kh)*OWp , +TM ) of the per-batch patch slab are exactly the
    # KW-folded windows for this output-row tile at kernel row `kh`.
    start = pl.multiple_of((t * toh + kh) * ow_pad, 8)
    lhs = p_ref[pl.ds(start, tm), :]                       # (TM, KW*CIN) bf16
    acc_ref[...] += jnp.dot(lhs, w_ref[kh],                # (KW*CIN, COUT) bf16
                            preferred_element_type=jnp.float32)

    @pl.when(kh == KH - 1)
    def _finalize():
        y = acc_ref[...] + b_ref[...]          # bias (1, COUT) broadcast, f32
        y = jnp.maximum(y, CLAMP_MIN)          # torch.clamp_min
        y = jnp.minimum(y, CLAMP_MAX)          # torch.clamp_max
        o_ref[...] = y.astype(o_ref.dtype)


def conv_clamp(x_nchw, weight_oihw, bias):
    N, C, H, W = x_nchw.shape
    assert C == CIN
    OH = H + 2 * PAD - KH + 1
    OW = W + 2 * PAD - KW + 1
    assert OH >= 1 and OW >= 1, "spatial dims too small for 9x9 kernel, pad=1"

    KWC = KW * CIN                                   # 144 (>=128 contraction)
    OW_pad = _round_up(OW, 8)                        # sublane-aligned row width
    TOH = max(1, min(OH, TARGET_TM // OW_pad))       # output rows per tile
    OH_pad = _round_up(OH, TOH)
    T = OH_pad // TOH
    TM = TOH * OW_pad                                # output-rows tile (mult of 8)

    H_rows = OH_pad + KH - 1                         # padded input rows needed
    W_cols = OW_pad + KW - 1                         # padded input cols needed

    # ---- glue: NCHW -> NHWC, pad, KW-fold (lane-dense K), bf16 cast ----------
    x_nhwc = jnp.transpose(x_nchw, (0, 2, 3, 1))
    x_pad = jnp.pad(x_nhwc, ((0, 0),
                             (PAD, H_rows - H - PAD),
                             (PAD, W_cols - W - PAD),
                             (0, 0)))
    # p3[n, h*OWp + ow, kw*CIN + c] = x_pad[n, h, ow + kw, c]   (~9x input only)
    xw = jnp.concatenate([x_pad[:, :, kw:kw + OW_pad, :] for kw in range(KW)],
                         axis=-1)                    # (N, H_rows, OW_pad, KWC)
    HP3 = H_rows * OW_pad
    p3 = xw.reshape(N, HP3, KWC).astype(jnp.bfloat16)

    # OIHW -> (KH, KW*CIN, COUT), bf16, kept fully resident in VMEM.
    w_r = jnp.transpose(weight_oihw, (2, 3, 1, 0)).reshape(KH, KWC, COUT)
    w_r = w_r.astype(jnp.bfloat16)
    b_r = bias.reshape(1, COUT).astype(jnp.float32)

    kernel = functools.partial(_conv_kernel, toh=TOH, ow_pad=OW_pad, tm=TM)

    out3 = pl.pallas_call(
        kernel,
        out_shape=jax.ShapeDtypeStruct((N, OH_pad * OW_pad, COUT), x_nchw.dtype),
        grid_spec=pltpu.PrefetchScalarGridSpec(
            num_scalar_prefetch=0,
            grid=(N, T, KH),
            in_specs=[
                # per-batch patch slab, resident across (row_tile, kh)
                pl.BlockSpec((None, HP3, KWC), lambda n, t, kh: (n, 0, 0)),
                # full weight, resident (single DMA)
                pl.BlockSpec((KH, KWC, COUT), lambda n, t, kh: (0, 0, 0)),
                pl.BlockSpec((1, COUT), lambda n, t, kh: (0, 0)),
            ],
            out_specs=pl.BlockSpec((None, TM, COUT), lambda n, t, kh: (n, t, 0)),
            scratch_shapes=[pltpu.VMEM((TM, COUT), jnp.float32)],
        ),
        compiler_params=pltpu.CompilerParams(
            dimension_semantics=("parallel", "parallel", "arbitrary")),
    )(p3, w_r, b_r)

    out = out3.reshape(N, OH_pad, OW_pad, COUT)[:, :OH, :OW, :]
    return jnp.transpose(out, (0, 3, 1, 2))          # back to NCHW


if __name__ == "__main__":
    key = jax.random.PRNGKey(0)
    kx, kw_, kb = jax.random.split(key, 3)

    # Small shape consistent with the module (9x9 kernel, pad=1 needs spatial
    # >= 7; the original 5x5 input is invalid for this conv, so use 16x16).
    N, H, W = 2, 16, 16
    x = jax.random.normal(kx, (N, CIN, H, W), jnp.float32)

    fan_in = CIN * KH * KW
    bound = 1.0 / math.sqrt(fan_in)
    weight = jax.random.uniform(kw_, (COUT, CIN, KH, KW), jnp.float32,
                                -bound, bound)
    bias = jax.random.uniform(kb, (COUT,), jnp.float32, -bound, bound)

    out = jax.jit(conv_clamp)(x, weight, bias)
    out = jax.block_until_ready(out)

    OH = H + 2 * PAD - KH + 1
    OW = W + 2 * PAD - KW + 1
    assert out.shape == (N, COUT, OH, OW)

    def ref_conv(xx, ww):
        r = lax.conv_general_dilated(
            xx, ww, window_strides=(1, 1),
            padding=((PAD, PAD), (PAD, PAD)),
            dimension_numbers=("NCHW", "OIHW", "NCHW"),
            precision=lax.Precision.HIGHEST)
        return jnp.clip(r + bias[None, :, None, None], CLAMP_MIN, CLAMP_MAX)

    # Tight check against a reference with bf16-rounded operands (same math as
    # the kernel: bf16 inputs, f32 accumulation).
    ref_bf16 = ref_conv(x.astype(jnp.bfloat16).astype(jnp.float32),
                        weight.astype(jnp.bfloat16).astype(jnp.float32))
    assert jnp.allclose(out, ref_bf16, atol=2e-3, rtol=2e-3)

    # Looser semantic check against the full-precision f32 reference.
    ref_f32 = ref_conv(x, weight)
    assert out.shape == ref_f32.shape
    assert jnp.allclose(out, ref_f32, atol=5e-2, rtol=5e-2)

    print("KERNEL_OK")
</pallas_src>

<mosaic_0001>
module attributes {stable_mosaic.version = 11 : i64} {
  func.func @_conv_kernel(%arg0: i32, %arg1: i32, %arg2: i32, %arg3: memref<1x288x144xbf16, #tpu.memory_space<vmem>>, %arg4: memref<9x144x128xbf16, #tpu.memory_space<vmem>>, %arg5: memref<1x128xf32, #tpu.memory_space<vmem>>, %arg6: memref<1x160x128xf32, #tpu.memory_space<vmem>>, %arg7: memref<160x128xf32, #tpu.memory_space<vmem>>) attributes {dimension_semantics = [#tpu.dimension_semantics<parallel>, #tpu.dimension_semantics<parallel>, #tpu.dimension_semantics<arbitrary>], iteration_bounds = array<i64: 2, 1, 9>, scalar_prefetch = 0 : i64, scratch_operands = 1 : i64, tpu.core_type = #tpu.core_type<tc>, window_params = [{transform_indices = @transform_0, window_bounds = array<i64: 1, 288, 144>}, {pipeline_mode = #tpu.pipeline_mode<synchronous>, transform_indices = @transform_1, window_bounds = array<i64: 9, 144, 128>}, {pipeline_mode = #tpu.pipeline_mode<synchronous>, transform_indices = @transform_2, window_bounds = array<i64: 1, 128>}, {transform_indices = @transform_3, window_bounds = array<i64: 1, 160, 128>}]} {
    %c0_i32 = arith.constant 0 : i32
    %0 = arith.cmpi eq, %arg2, %c0_i32 : i32
    %1 = arith.extui %0 : i1 to i32
    %c0_i32_0 = arith.constant 0 : i32
    %2 = arith.cmpi ne, %1, %c0_i32_0 : i32
    scf.if %2 {
      %cst_9 = arith.constant 0.000000e+00 : f32
      %20 = vector.broadcast %cst_9 : f32 to vector<160x128xf32>
      %c0_10 = arith.constant 0 : index
      %c0_11 = arith.constant 0 : index
      %21 = vector.load %arg7[%c0_10, %c0_11] : memref<160x128xf32, #tpu.memory_space<vmem>>, vector<160x128xf32>
      tpu.vector_store %arg7[%c0_10, %c0_11], %20 {strides = array<i32>} : memref<160x128xf32, #tpu.memory_space<vmem>>, vector<160x128xf32>,
    } else {
    }
    %c10_i32 = arith.constant 10 : i32
    %3 = arith.muli %arg1, %c10_i32 : i32
    %4 = arith.addi %3, %arg2 : i32
    %c16_i32 = arith.constant 16 : i32
    %5 = arith.muli %4, %c16_i32 : i32
    %6 = tpu.assume_multiple %5, 8 : i32
    %c0 = arith.constant 0 : index
    %7 = arith.index_cast %6 : i32 to index
    %c0_1 = arith.constant 0 : index
    %8 = vector.load %arg3[%c0, %7, %c0_1] : memref<1x288x144xbf16, #tpu.memory_space<vmem>>, vector<1x160x144xbf16>
    %9 = vector.shape_cast %8 : vector<1x160x144xbf16> to vector<160x144xbf16>
    %c0_2 = arith.constant 0 : index
    %c0_3 = arith.constant 0 : index
    %10 = vector.load %arg7[%c0_2, %c0_3] : memref<160x128xf32, #tpu.memory_space<vmem>>, vector<160x128xf32>
    %11 = arith.index_cast %arg2 : i32 to index
    %c0_4 = arith.constant 0 : index
    %c0_5 = arith.constant 0 : index
    %12 = vector.load %arg4[%11, %c0_4, %c0_5] : memref<9x144x128xbf16, #tpu.memory_space<vmem>>, vector<1x144x128xbf16>
    %13 = vector.shape_cast %12 : vector<1x144x128xbf16> to vector<144x128xbf16>
    %cst = arith.constant dense<0.000000e+00> : vector<160x128xf32>
    %14 = tpu.matmul %9, %13, %cst {dimension_numbers = #tpu.dot_dimension_numbers<[1], [0], [0], [1], [0, 0, 1, 1], [], []>} : vector<160x144xbf16>, vector<144x128xbf16>, vector<160x128xf32> -> vector<160x128xf32>
    %15 = arith.addf %10, %14 : vector<160x128xf32>
    %c0_6 = arith.constant 0 : index
    %c0_7 = arith.constant 0 : index
    %16 = vector.load %arg7[%c0_6, %c0_7] : memref<160x128xf32, #tpu.memory_space<vmem>>, vector<160x128xf32>
    tpu.vector_store %arg7[%c0_6, %c0_7], %15 {strides = array<i32>} : memref<160x128xf32, #tpu.memory_space<vmem>>, vector<160x128xf32>,
    %c8_i32 = arith.constant 8 : i32
    %17 = arith.cmpi eq, %arg2, %c8_i32 : i32
    %18 = arith.extui %17 : i1 to i32
    %c0_i32_8 = arith.constant 0 : i32
    %19 = arith.cmpi ne, %18, %c0_i32_8 : i32
    scf.if %19 {
      %c0_9 = arith.constant 0 : index
      %c0_10 = arith.constant 0 : index
      %20 = vector.load %arg7[%c0_9, %c0_10] : memref<160x128xf32, #tpu.memory_space<vmem>>, vector<160x128xf32>
      %c0_11 = arith.constant 0 : index
      %c0_12 = arith.constant 0 : index
      %21 = vector.load %arg5[%c0_11, %c0_12] : memref<1x128xf32, #tpu.memory_space<vmem>>, vector<1x128xf32>
      %22 = vector.broadcast %21 : vector<1x128xf32> to vector<160x128xf32>
      %23 = arith.addf %20, %22 : vector<160x128xf32>
      %cst_13 = arith.constant 2.000000e-01 : f32
      %24 = vector.broadcast %cst_13 : f32 to vector<160x128xf32>
      %25 = arith.maximumf %23, %24 : vector<160x128xf32>
      %cst_14 = arith.constant 0.899999976 : f32
      %26 = vector.broadcast %cst_14 : f32 to vector<160x128xf32>
      %27 = arith.minimumf %25, %26 : vector<160x128xf32>
      %c0_15 = arith.constant 0 : index
      %c0_16 = arith.constant 0 : index
      %c0_17 = arith.constant 0 : index
      %28 = vector.load %arg6[%c0_15, %c0_16, %c0_17] : memref<1x160x128xf32, #tpu.memory_space<vmem>>, vector<1x160x128xf32>
      %29 = vector.shape_cast %28 : vector<1x160x128xf32> to vector<160x128xf32>
      %30 = vector.shape_cast %27 : vector<160x128xf32> to vector<1x160x128xf32>
      tpu.vector_store %arg6[%c0_15, %c0_16, %c0_17], %30 {strides = array<i32>} : memref<1x160x128xf32, #tpu.memory_space<vmem>>, vector<1x160x128xf32>,
    } else {
    }
    return
  }
  func.func @transform_0(%arg0: i32, %arg1: i32, %arg2: i32) -> (i32, i32, i32) {
    %c0_i32 = arith.constant 0 : i32
    %c0_i32_0 = arith.constant 0 : i32
    %c0_i32_1 = arith.constant 0 : i32
    return %arg0, %c0_i32, %c0_i32_0 : i32, i32, i32
  }
  func.func @transform_1(%arg0: i32, %arg1: i32, %arg2: i32) -> (i32, i32, i32) {
    %c0_i32 = arith.constant 0 : i32
    %c0_i32_0 = arith.constant 0 : i32
    %c0_i32_1 = arith.constant 0 : i32
    %c0_i32_2 = arith.constant 0 : i32
    return %c0_i32, %c0_i32_0, %c0_i32_1 : i32, i32, i32
  }
  func.func @transform_2(%arg0: i32, %arg1: i32, %arg2: i32) -> (i32, i32) {
    %c0_i32 = arith.constant 0 : i32
    %c0_i32_0 = arith.constant 0 : i32
    %c0_i32_1 = arith.constant 0 : i32
    return %c0_i32, %c0_i32_0 : i32, i32
  }
  func.func @transform_3(%arg0: i32, %arg1: i32, %arg2: i32) -> (i32, i32, i32) {
    %c0_i32 = arith.constant 0 : i32
    %c0_i32_0 = arith.constant 0 : i32
    return %arg0, %arg1, %c0_i32 : i32, i32, i32
  }
}

</mosaic_0001>

<llo_original>
// kernel: conv_clamp.1
$region0: #{conv_clamp.1}
  #allocation0 [shape = 'u32[]', space=smem, size = 0x4, offset = 0x4, fixed_abs, tag = 'smem constant byte address 0x4 - core index']
  #allocation1 [shape = 'u32[144,128]{1,0:T(1,128)}', space=vmem, size = 0x12000, scoped, tag = 'internal scratch']
  #allocation2 [shape = 'f32[160,128]{1,0:T(8,128)}', space=vmem, size = 0x14000, scoped, tag = 'scratch operand']
  %s0 = inlined_call_operand.vmem [shape: bf16[2,288,144], index: 0, kind: input, shape index: {}]
  %s1 = inlined_call_operand.vmem [shape: bf16[9,144,128], index: 1, kind: input, shape index: {}]
  %s2 = inlined_call_operand.vmem [shape: f32[1,128], index: 2, kind: input, shape index: {}]
  %s3 = inlined_call_operand.vmem [shape: f32[2,160,128], index: 3, kind: output, shape index: {}]
  %s4 = sld [smem:[#allocation0]]
  $region53: #{conv_clamp.1} parent=0
    _
  %s6 = ssub.s32 1, %s4
  %s7 = scalar_select 0, %s6, %s4
  loop: start=0, step=1, limit=20
  $region2: #{conv_clamp.1} parent=0 // loop_pre_header
    _
  $region3: #{conv_clamp.1} parent=0 // loop_header
    %s9 = sphi 0, %s13
    %p10 = scmp.ge.s32.totalorder %s9, 20
    %s16 = sphi 0, %s35
    %s17 = sphi 0, %s31
    %s18 = sphi 0, %s27
    %s19 = sphi 0, %s16
    %s20 = sphi 0, %s17
    %s21 = sphi 0, %s18
    %s22 = sphi 0, %s19
    %s23 = sphi 0, %s20
    %s24 = sphi 0, %s21
    %s38 = sphi 0, %s40
    %s41 = sphi 0, %s38
    %s42 = sphi 0, %s41
    %s58 = sphi 0, %s42
    %s62 = sphi 0, %s62
    %s64 = sphi 0, %s62
    %s65 = sphi 0, %s64
    %s79 = sphi 0, %s65
    %s83 = sphi 0, %s83
    %s85 = sphi 0, %s83
    %s86 = sphi 0, %s85
    %s100 = sphi 0, %s86
    %s108 = sphi 0, %s110
    %s111 = sphi 0, %s108
    %s112 = sphi 0, %s111
    %s128 = sphi 0, %s112
  $region4: #{conv_clamp.1} parent=0 // loop_header_branch
    %12 = sbr.rel (%p10) target = $region8
  $region5: #{conv_clamp.1} parent=0 // loop_body
    %s14 = ssub.s32 %s9, 1
    %s15 = ssub.s32 %s9, 2
    %s25 = sadd.s32 1, %s18
    %p26 = scmp.ge.s32.totalorder %s25, 9
    %s27 = scalar_select %p26, 0, %s25
    %s28 = sadd.s32 1, %s17
    %s29 = scalar_select %p26, %s28, %s17
    %p30 = scmp.ge.s32.totalorder %s29, 1
    %s31 = scalar_select %p30, 0, %s29
    %s32 = sadd.s32 1, %s16
    %s33 = scalar_select %p30, %s32, %s16
    %p34 = scmp.ge.s32.totalorder %s33, 2
    %s35 = scalar_select %p34, 0, %s33
    %s36 = ssub.s32 %s16, %s35
    %p37 = scmp.eq.s32.totalorder %s36, 0
    %s39 = sadd.s32 %s38, 1
    %s40 = scalar_select %p37, %s38, %s39
    %p43 = pneg %p37
    %p44 = scmp.eq.s32.totalorder %s9, 17
    %p45 = por %p43, %p44
    %p46 = scmp.ne.s32.totalorder %s38, %s41
    %p47 = scmp.eq.s32.totalorder %s9, 0
    %p48 = por %p46, %p47
    %p49 = scmp.ne.s32.totalorder %s38, %s41
    %p50 = scmp.eq.s32.totalorder %s14, 17
    %p51 = por %p49, %p50
    %p52 = scmp.ne.s32.totalorder %s41, %s42
    %p53 = scmp.eq.s32.totalorder %s14, 0
    %p54 = por %p52, %p53
    %p55 = scmp.ne.s32.totalorder %s41, %s42
    %p56 = scmp.eq.s32.totalorder %s15, 17
    %p57 = por %p55, %p56
    %p59 = scmp.ne.s32.totalorder %s42, %s58
    %p60 = scmp.eq.s32.totalorder %s15, 0
    %p61 = por %p59, %p60
    %s63 = sadd.s32 %s62, 1
    %p66 = scmp.eq.s32.totalorder %s9, 17
    %p67 = scmp.ne.s32.totalorder %s62, %s64
    %p68 = scmp.eq.s32.totalorder %s9, 0
    %p69 = por %p67, %p68
    %p70 = scmp.ne.s32.totalorder %s62, %s64
    %p71 = scmp.eq.s32.totalorder %s14, 17
    %p72 = por %p70, %p71
    %p73 = scmp.ne.s32.totalorder %s64, %s65
    %p74 = scmp.eq.s32.totalorder %s14, 0
    %p75 = por %p73, %p74
    %p76 = scmp.ne.s32.totalorder %s64, %s65
    %p77 = scmp.eq.s32.totalorder %s15, 17
    %p78 = por %p76, %p77
    %p80 = scmp.ne.s32.totalorder %s65, %s79
    %p81 = scmp.eq.s32.totalorder %s15, 0
    %p82 = por %p80, %p81
    %s84 = sadd.s32 %s83, 1
    %p87 = scmp.eq.s32.totalorder %s9, 17
    %p88 = scmp.ne.s32.totalorder %s83, %s85
    %p89 = scmp.eq.s32.totalorder %s9, 0
    %p90 = por %p88, %p89
    %p91 = scmp.ne.s32.totalorder %s83, %s85
    %p92 = scmp.eq.s32.totalorder %s14, 17
    %p93 = por %p91, %p92
    %p94 = scmp.ne.s32.totalorder %s85, %s86
    %p95 = scmp.eq.s32.totalorder %s14, 0
    %p96 = por %p94, %p95
    %p97 = scmp.ne.s32.totalorder %s85, %s86
    %p98 = scmp.eq.s32.totalorder %s15, 17
    %p99 = por %p97, %p98
    %p101 = scmp.ne.s32.totalorder %s86, %s100
    %p102 = scmp.eq.s32.totalorder %s15, 0
    %p103 = por %p101, %p102
    %s104 = ssub.s32 %s16, %s35
    %s105 = ssub.s32 %s17, %s31
    %s106 = sor.u32 %s104, %s105
    %p107 = scmp.eq.s32.totalorder %s106, 0
    %s109 = sadd.s32 %s108, 1
    %s110 = scalar_select %p107, %s108, %s109
    %p113 = pneg %p107
    %p114 = scmp.eq.s32.totalorder %s9, 17
    %p115 = por %p113, %p114
    %p116 = scmp.ne.s32.totalorder %s108, %s111
    %p117 = scmp.eq.s32.totalorder %s9, 0
    %p118 = por %p116, %p117
    %p119 = scmp.ne.s32.totalorder %s108, %s111
    %p120 = scmp.eq.s32.totalorder %s14, 17
    %p121 = por %p119, %p120
    %p122 = scmp.ne.s32.totalorder %s111, %s112
    %p123 = scmp.eq.s32.totalorder %s14, 0
    %p124 = por %p122, %p123
    %p125 = scmp.ne.s32.totalorder %s111, %s112
    %p126 = scmp.eq.s32.totalorder %s15, 17
    %p127 = por %p125, %p126
    %p129 = scmp.ne.s32.totalorder %s112, %s128
    %p130 = scmp.eq.s32.totalorder %s15, 0
    %p131 = por %p129, %p130
    %p132 = scmp.le.s32.totalorder 1, %s9
    %p133 = scmp.lt.s32.totalorder %s9, 19
    %p134 = pnand %p132, %p133
    %p135 = pneg %p134
    // Predicated region
    $region9: #{conv_clamp.1} parent=5 // pred_check
      _
    $region10: #{conv_clamp.1} parent=5 // pred_check_branch
      %137 = sbr.rel (%p134) target = $region12
    $region11: #{conv_clamp.1} parent=5 // pred_region
      %s138 = ssub.s32 %s9, 1
      // Predicated region
      $region13: #{conv_clamp.1} parent=11 // pred_check
        %p139 = pneg %p75
      $region14: #{conv_clamp.1} parent=11 // pred_check_branch
        %141 = sbr.rel (%p139) target = $region16
      $region15: #{conv_clamp.1} parent=11 // pred_region
        _
      $region16: #{conv_clamp.1} parent=11 // pred_fallthru
        _
      // Predicated region
      $region17: #{conv_clamp.1} parent=11 // pred_check
        %p142 = pneg %p96
      $region18: #{conv_clamp.1} parent=11 // pred_check_branch
        %144 = sbr.rel (%p142) target = $region20
      $region19: #{conv_clamp.1} parent=11 // pred_region
        _
      $region20: #{conv_clamp.1} parent=11 // pred_fallthru
        _
    $region12: #{conv_clamp.1} parent=5 // pred_fallthru
      _
    %p145 = scmp.lt.s32.totalorder %s9, 18
    // Predicated region
    $region21: #{conv_clamp.1} parent=5 // pred_check
      %p146 = pneg %p145
    $region22: #{conv_clamp.1} parent=5 // pred_check_branch
      %148 = sbr.rel (%p146) target = $region24
    $region23: #{conv_clamp.1} parent=5 // pred_region
      // Predicated region
      $region25: #{conv_clamp.1} parent=23 // pred_check
        %p149 = pneg %p48
      $region26: #{conv_clamp.1} parent=23 // pred_check_branch
        %151 = sbr.rel (%p149) target = $region28
      $region27: #{conv_clamp.1} parent=23 // pred_region
        %p152 = scmp.lt.s32.totalorder %s16, 1
        %s153 = scalar_select %p152, %s16, 1
        %s154 = smul.addr %s153, 72
        %s155 = smul.addr %s154, 4
        %s156 = scalar_lea.vmem %s0, %s155
      $region28: #{conv_clamp.1} parent=23 // pred_fallthru
        _
    $region24: #{conv_clamp.1} parent=5 // pred_fallthru
      _
    %p157 = scmp.le.s32.totalorder 1, %s9
    %p158 = scmp.lt.s32.totalorder %s9, 19
    %p159 = pnand %p157, %p158
    %p160 = pneg %p159
    // Predicated region
    $region29: #{conv_clamp.1} parent=5 // pred_check
      _
    $region30: #{conv_clamp.1} parent=5 // pred_check_branch
      %162 = sbr.rel (%p159) target = $region32
    $region31: #{conv_clamp.1} parent=5 // pred_region
      %s163 = ssub.s32 %s9, 1
      %p164 = scmp.lt.s32.totalorder %s19, 1
      %s165 = scalar_select %p164, %s19, 1
      %s166 = smul.addr %s165, 72
      %s167 = smul.addr %s166, 4
      %s168 = scalar_lea.vmem %s0, %s167
      %p169 = pneg %p54
      %p170 = pneg %p51
      %p171 = pneg %p75
      %p172 = pneg %p72
      %p173 = pneg %p96
      %p174 = pneg %p93
      %p175 = pneg %p124
      %p176 = pneg %p121
      %s177 = smul.u32 20, %s20
      %p178 = scmp.lt.s32.totalorder %s19, 1
      %s179 = scalar_select %p178, %s19, 1
      %p180 = scmp.lt.s32.totalorder %s177, 19
      %s181 = scalar_select %p180, %s177, 19
      %s182 = smul.addr %s179, 20
      %s183 = sadd.s32 %s181, %s182
      %s184 = smul.addr %s183, 8
      %s185 = scalar_lea.vmem %s3, %s184
      %p186 = scmp.lt.s32.totalorder %s19, 1
      %s187 = scalar_select %p186, %s19, 1
      %s188 = smul.addr %s187, 72
      %s189 = smul.addr %s188, 4
      %s190 = scalar_lea.vmem %s0, %s189
      %s191 = smul.u32 20, %s20
      %p192 = scmp.lt.s32.totalorder %s19, 1
      %s193 = scalar_select %p192, %s19, 1
      %p194 = scmp.lt.s32.totalorder %s191, 19
      %s195 = scalar_select %p194, %s191, 19
      %s196 = smul.addr %s193, 20
      %s197 = sadd.s32 %s195, %s196
      %s198 = smul.addr %s197, 8
      %s199 = scalar_lea.vmem %s3, %s198
      %s200 = smul.u32 20, %s20
      %p202 = scmp.eq.s32.totalorder %s21, 0
      // Predicated region
      $region33: #{conv_clamp.1} parent=31 // pred_check
        %p203 = pneg %p202
      $region34: #{conv_clamp.1} parent=31 // pred_check_branch
        %205 = sbr.rel (%p203) target = $region36
      $region35: #{conv_clamp.1} parent=31 // pred_region
        %206 = vst [vmem:[#allocation2] sm:$0xff] 0.0
        %207 = vst [vmem:[#allocation2 + $0x8] sm:$0xff] 0.0
        %208 = vst [vmem:[#allocation2 + $0x10] sm:$0xff] 0.0
        %209 = vst [vmem:[#allocation2 + $0x18] sm:$0xff] 0.0
        %210 = vst [vmem:[#allocation2 + $0x20] sm:$0xff] 0.0
        %211 = vst [vmem:[#allocation2 + $0x28] sm:$0xff] 0.0
        %212 = vst [vmem:[#allocation2 + $0x30] sm:$0xff] 0.0
        %213 = vst [vmem:[#allocation2 + $0x38] sm:$0xff] 0.0
        %214 = vst [vmem:[#allocation2 + $0x40] sm:$0xff] 0.0
        %215 = vst [vmem:[#allocation2 + $0x48] sm:$0xff] 0.0
        %216 = vst [vmem:[#allocation2 + $0x50] sm:$0xff] 0.0
        %217 = vst [vmem:[#allocation2 + $0x58] sm:$0xff] 0.0
        %218 = vst [vmem:[#allocation2 + $0x60] sm:$0xff] 0.0
        %219 = vst [vmem:[#allocation2 + $0x68] sm:$0xff] 0.0
        %220 = vst [vmem:[#allocation2 + $0x70] sm:$0xff] 0.0
        %221 = vst [vmem:[#allocation2 + $0x78] sm:$0xff] 0.0
        %222 = vst [vmem:[#allocation2 + $0x80] sm:$0xff] 0.0
        %223 = vst [vmem:[#allocation2 + $0x88] sm:$0xff] 0.0
        %224 = vst [vmem:[#allocation2 + $0x90] sm:$0xff] 0.0
        %225 = vst [vmem:[#allocation2 + $0x98] sm:$0xff] 0.0
      $region36: #{conv_clamp.1} parent=31 // pred_fallthru
        _
      %s226 = smul.u32 %s20, 10
      %s227 = sadd.s32 %s226, %s21
      %s228 = smul.u32 %s227, 16
      %s229 = sshra.s32 %s228, 3
      %s230 = sand.u32 %s228, 7
      %s231 = smul.u32 %s229, 2
      %s232 = smul.addr %s231, 4
      %s233 = scalar_lea.vmem %s190, %s232
      %v234 = vld [vmem:[%s233] sm:$0xff]
      %v235 = vld [vmem:[%s233 + $0x8] sm:$0xff]
      %v236 = vld [vmem:[%s233 + $0x10] sm:$0xff]
      %v237 = vld [vmem:[%s233 + $0x18] sm:$0xff]
      %v238 = vld [vmem:[%s233 + $0x20] sm:$0xff]
      %v239 = vld [vmem:[%s233 + $0x28] sm:$0xff]
      %v240 = vld [vmem:[%s233 + $0x30] sm:$0xff]
      %v241 = vld [vmem:[%s233 + $0x38] sm:$0xff]
      %v242 = vld [vmem:[%s233 + $0x40] sm:$0xff]
      %v243 = vld [vmem:[%s233 + $0x48] sm:$0xff]
      %v244 = vld [vmem:[%s233 + $0x50] sm:$0xff]
      %v245 = vld [vmem:[%s233 + $0x58] sm:$0xff]
      %v246 = vld [vmem:[%s233 + $0x60] sm:$0xff]
      %v247 = vld [vmem:[%s233 + $0x68] sm:$0xff]
      %v248 = vld [vmem:[%s233 + $0x70] sm:$0xff]
      %v249 = vld [vmem:[%s233 + $0x78] sm:$0xff]
      %v250 = vld [vmem:[%s233 + $0x80] sm:$0xff]
      %v251 = vld [vmem:[%s233 + $0x88] sm:$0xff]
      %v252 = vld [vmem:[%s233 + $0x90] sm:$0xff]
      %v253 = vld [vmem:[%s233 + $0x98] sm:$0xff]
      %v254 = vld [vmem:[#allocation2] sm:$0xff]
      %v255 = vld [vmem:[#allocation2 + $0x8] sm:$0xff]
      %v256 = vld [vmem:[#allocation2 + $0x10] sm:$0xff]
      %v257 = vld [vmem:[#allocation2 + $0x18] sm:$0xff]
      %v258 = vld [vmem:[#allocation2 + $0x20] sm:$0xff]
      %v259 = vld [vmem:[#allocation2 + $0x28] sm:$0xff]
      %v260 = vld [vmem:[#allocation2 + $0x30] sm:$0xff]
      %v261 = vld [vmem:[#allocation2 + $0x38] sm:$0xff]
      %v262 = vld [vmem:[#allocation2 + $0x40] sm:$0xff]
      %v263 = vld [vmem:[#allocation2 + $0x48] sm:$0xff]
      %v264 = vld [vmem:[#allocation2 + $0x50] sm:$0xff]
      %v265 = vld [vmem:[#allocation2 + $0x58] sm:$0xff]
      %v266 = vld [vmem:[#allocation2 + $0x60] sm:$0xff]
      %v267 = vld [vmem:[#allocation2 + $0x68] sm:$0xff]
      %v268 = vld [vmem:[#allocation2 + $0x70] sm:$0xff]
      %v269 = vld [vmem:[#allocation2 + $0x78] sm:$0xff]
      %v270 = vld [vmem:[#allocation2 + $0x80] sm:$0xff]
      %v271 = vld [vmem:[#allocation2 + $0x88] sm:$0xff]
      %v272 = vld [vmem:[#allocation2 + $0x90] sm:$0xff]
      %v273 = vld [vmem:[#allocation2 + $0x98] sm:$0xff]
      %s274 = smul.u32 %s21, 18
      %s275 = smul.addr %s274, 4
      %s276 = scalar_lea.vmem %s1, %s275
      %v277 = vld [vmem:[%s276] sm:$0xf]
      %v278 = vld [vmem:[%s276 + $0x4] sm:$0xf]
      %v279 = vld [vmem:[%s276 + $0x8] sm:$0xf]
      %v280 = vld [vmem:[%s276 + $0xc] sm:$0xf]
      %v281 = vld [vmem:[%s276 + $0x10] sm:$0xf]
      %v282 = vld [vmem:[%s276 + $0x14] sm:$0xf]
      %v283 = vld [vmem:[%s276 + $0x18] sm:$0xf]
      %v284 = vld [vmem:[%s276 + $0x1c] sm:$0xf]
      %v285 = vld [vmem:[%s276 + $0x20] sm:$0xf]
      %v286 = vld [vmem:[%s276 + $0x24] sm:$0xf]
      %v287 = vld [vmem:[%s276 + $0x28] sm:$0xf]
      %v288 = vld [vmem:[%s276 + $0x2c] sm:$0xf]
      %v289 = vld [vmem:[%s276 + $0x30] sm:$0xf]
      %v290 = vld [vmem:[%s276 + $0x34] sm:$0xf]
      %v291 = vld [vmem:[%s276 + $0x38] sm:$0xf]
      %v292 = vld [vmem:[%s276 + $0x3c] sm:$0xf]
      %v293 = vld [vmem:[%s276 + $0x40] sm:$0xf]
      %v294 = vld [vmem:[%s276 + $0x44] sm:$0xf]
      %v315 = vunpack.c.l.b16 %v234
      %v316 = vunpack.c.h.b16 %v234
      %v317 = vunpack.c.l.b16 %v235
      %v318 = vunpack.c.h.b16 %v235
      %v319 = vunpack.c.l.b16 %v236
      %v320 = vunpack.c.h.b16 %v236
      %v321 = vunpack.c.l.b16 %v237
      %v322 = vunpack.c.h.b16 %v237
      %v323 = vunpack.c.l.b16 %v238
      %v324 = vunpack.c.h.b16 %v238
      %v325 = vunpack.c.l.b16 %v239
      %v326 = vunpack.c.h.b16 %v239
      %v327 = vunpack.c.l.b16 %v240
      %v328 = vunpack.c.h.b16 %v240
      %v329 = vunpack.c.l.b16 %v241
      %v330 = vunpack.c.h.b16 %v241
      %v331 = vunpack.c.l.b16 %v242
      %v332 = vunpack.c.h.b16 %v242
      %v333 = vunpack.c.l.b16 %v243
      %v334 = vunpack.c.h.b16 %v243
      %v335 = vunpack.c.l.b16 %v244
      %v336 = vunpack.c.h.b16 %v244
      %v337 = vunpack.c.l.b16 %v245
      %v338 = vunpack.c.h.b16 %v245
      %v339 = vunpack.c.l.b16 %v246
      %v340 = vunpack.c.h.b16 %v246
      %v341 = vunpack.c.l.b16 %v247
      %v342 = vunpack.c.h.b16 %v247
      %v343 = vunpack.c.l.b16 %v248
      %v344 = vunpack.c.h.b16 %v248
      %v345 = vunpack.c.l.b16 %v249
      %v346 = vunpack.c.h.b16 %v249
      %v347 = vunpack.c.l.b16 %v250
      %v348 = vunpack.c.h.b16 %v250
      %v349 = vunpack.c.l.b16 %v251
      %v350 = vunpack.c.h.b16 %v251
      %v351 = vunpack.c.l.b16 %v252
      %v352 = vunpack.c.h.b16 %v252
      %v353 = vunpack.c.l.b16 %v253
      %v354 = vunpack.c.h.b16 %v253
      %v355 = vpack.c.b16 %v317, %v315
      %v356 = vpack.c.b16 %v318, %v316
      %v357 = vpack.c.b16 %v321, %v319
      %v358 = vpack.c.b16 %v322, %v320
      %v359 = vpack.c.b16 %v325, %v323
      %v360 = vpack.c.b16 %v326, %v324
      %v361 = vpack.c.b16 %v329, %v327
      %v362 = vpack.c.b16 %v330, %v328
      %v363 = vpack.c.b16 %v333, %v331
      %v364 = vpack.c.b16 %v334, %v332
      %v365 = vpack.c.b16 %v337, %v335
      %v366 = vpack.c.b16 %v338, %v336
      %v367 = vpack.c.b16 %v341, %v339
      %v368 = vpack.c.b16 %v342, %v340
      %v369 = vpack.c.b16 %v345, %v343
      %v370 = vpack.c.b16 %v346, %v344
      %v371 = vpack.c.b16 %v349, %v347
      %v372 = vpack.c.b16 %v350, %v348
      %v373 = vpack.c.b16 %v353, %v351
      %v374 = vpack.c.b16 %v354, %v352
      %v403 = vunpack.c.l.b16 %v277
      %v404 = vunpack.c.l.b16 %v278
      %v405 = vunpack.c.l.b16 %v279
      %v406 = vunpack.c.l.b16 %v280
      %v407 = vunpack.c.l.b16 %v281
      %v408 = vunpack.c.l.b16 %v282
      %v409 = vunpack.c.l.b16 %v283
      %v410 = vunpack.c.l.b16 %v284
      %v411 = vunpack.c.l.b16 %v285
      %v412 = vunpack.c.l.b16 %v286
      %v413 = vunpack.c.l.b16 %v287
      %v414 = vunpack.c.l.b16 %v288
      %v415 = vunpack.c.l.b16 %v289
      %v416 = vunpack.c.l.b16 %v290
      %v417 = vunpack.c.l.b16 %v291
      %v418 = vunpack.c.l.b16 %v292
      %v419 = vunpack.c.l.b16 %v293
      %v420 = vunpack.c.l.b16 %v294
      %v421 = vpack.c.b16 %v404, %v403
      %v422 = vpack.c.b16 %v406, %v405
      %v423 = vpack.c.b16 %v408, %v407
      %v424 = vpack.c.b16 %v410, %v409
      %v425 = vpack.c.b16 %v412, %v411
      %v426 = vpack.c.b16 %v414, %v413
      %v427 = vpack.c.b16 %v416, %v415
      %v428 = vpack.c.b16 %v418, %v417
      %v429 = vpack.c.b16 %v420, %v419
      %vm439 = vcmask 130048
      %v441 = vsel %vm439, %v356, 0
      %v444 = vsel %vm439, %v358, 0
      %v447 = vsel %vm439, %v360, 0
      %v450 = vsel %vm439, %v362, 0
      %v453 = vsel %vm439, %v364, 0
      %v456 = vsel %vm439, %v366, 0
      %v459 = vsel %vm439, %v368, 0
      %v462 = vsel %vm439, %v370, 0
      %v465 = vsel %vm439, %v372, 0
      %v468 = vsel %vm439, %v374, 0
      %470 = vmatprep.subr.bf16.mxu0 0
      %471 = vmatpush1.bf16.msra.mxu0 %v421
      %472 = vmatprep.subr.bf16.mxu0 0
      %473 = vmatpush1.bf16.msra.mxu0 %v422
      %474 = vmatprep.subr.bf16.mxu0 0
      %475 = vmatpush1.bf16.msra.mxu0 %v423
      %476 = vmatprep.subr.bf16.mxu0 0
      %477 = vmatpush1.bf16.msra.mxu0 %v424
      %478 = vmatprep.subr.bf16.mxu0 0
      %479 = vmatpush1.bf16.msra.mxu0 %v425
      %480 = vmatprep.subr.bf16.mxu0 0
      %481 = vmatpush1.bf16.msra.mxu0 %v426
      %482 = vmatprep.subr.bf16.mxu0 0
      %483 = vmatpush1.bf16.msra.mxu0 %v427
      %484 = vmatprep.subr.bf16.mxu0 0
      %485 = vmatpush1.bf16.msra.mxu0 %v428
      %486 = vmatprep.subr.bf16.mxu0 0
      %487 = vmatpush1.bf16.msra.mxu0 %v429
      %488 = vmatprep.subr.bf16.mxu0 0
      %489 = vmatpush1.bf16.msra.mxu0 0
      %490 = vmatprep.subr.bf16.mxu0 0
      %491 = vmatpush1.bf16.msra.mxu0 0
      %492 = vmatprep.subr.bf16.mxu0 0
      %493 = vmatpush1.bf16.msra.mxu0 0
      %494 = vmatprep.subr.bf16.mxu0 0
      %495 = vmatpush1.bf16.msra.mxu0 0
      %496 = vmatprep.subr.bf16.mxu0 0
      %497 = vmatpush1.bf16.msra.mxu0 0
      %498 = vmatprep.subr.bf16.mxu0 0
      %499 = vmatpush1.bf16.msra.mxu0 0
      %500 = vmatprep.subr.bf16.mxu0 0
      %501 = vmatpush1.bf16.msra.mxu0 0
      %502 = vmatprep.mubr.bf16.mxu0 %v441
      %503 = vmatmul.mubr.bf16.gmra.mrb[0].mxu0 %v355
      %v504 = vpop.f32.mrb[0].mxu0
      %v505 = vadd.f32 0.0, %v504
      %v506 = vpop.f32.mrb[0].mxu0
      %v507 = vpop.f32.mrb[0].mxu0
      %v508 = vadd.f32 0.0, %v507
      %v509 = vpop.f32.mrb[0].mxu0
      %510 = vmatprep.mubr.bf16.mxu0 %v444
      %511 = vmatmul.mubr.bf16.gmra.mrb[0].mxu0 %v357
      %v512 = vpop.f32.mrb[0].mxu0
      %v513 = vadd.f32 0.0, %v512
      %v514 = vpop.f32.mrb[0].mxu0
      %v515 = vpop.f32.mrb[0].mxu0
      %v516 = vadd.f32 0.0, %v515
      %v517 = vpop.f32.mrb[0].mxu0
      %518 = vmatprep.mubr.bf16.mxu0 %v447
      %519 = vmatmul.mubr.bf16.gmra.mrb[0].mxu0 %v359
      %v520 = vpop.f32.mrb[0].mxu0
      %v521 = vadd.f32 0.0, %v520
      %v522 = vpop.f32.mrb[0].mxu0
      %v523 = vpop.f32.mrb[0].mxu0
      %v524 = vadd.f32 0.0, %v523
      %v525 = vpop.f32.mrb[0].mxu0
      %526 = vmatprep.mubr.bf16.mxu0 %v450
      %527 = vmatmul.mubr.bf16.gmra.mrb[0].mxu0 %v361
      %v528 = vpop.f32.mrb[0].mxu0
      %v529 = vadd.f32 0.0, %v528
      %v530 = vpop.f32.mrb[0].mxu0
      %v531 = vpop.f32.mrb[0].mxu0
      %v532 = vadd.f32 0.0, %v531
      %v533 = vpop.f32.mrb[0].mxu0
      %534 = vmatprep.mubr.bf16.mxu0 %v453
      %535 = vmatmul.mubr.bf16.gmra.mrb[0].mxu0 %v363
      %v536 = vpop.f32.mrb[0].mxu0
      %v537 = vadd.f32 0.0, %v536
      %v538 = vpop.f32.mrb[0].mxu0
      %v539 = vpop.f32.mrb[0].mxu0
      %v540 = vadd.f32 0.0, %v539
      %v541 = vpop.f32.mrb[0].mxu0
      %542 = vmatprep.mubr.bf16.mxu0 %v456
      %543 = vmatmul.mubr.bf16.gmra.mrb[0].mxu0 %v365
      %v544 = vpop.f32.mrb[0].mxu0
      %v545 = vadd.f32 0.0, %v544
      %v546 = vpop.f32.mrb[0].mxu0
      %v547 = vpop.f32.mrb[0].mxu0
      %v548 = vadd.f32 0.0, %v547
      %v549 = vpop.f32.mrb[0].mxu0
      %550 = vmatprep.mubr.bf16.mxu0 %v459
      %551 = vmatmul.mubr.bf16.gmra.mrb[0].mxu0 %v367
      %v552 = vpop.f32.mrb[0].mxu0
      %v553 = vadd.f32 0.0, %v552
      %v554 = vpop.f32.mrb[0].mxu0
      %v555 = vpop.f32.mrb[0].mxu0
      %v556 = vadd.f32 0.0, %v555
      %v557 = vpop.f32.mrb[0].mxu0
      %558 = vmatprep.mubr.bf16.mxu0 %v462
      %559 = vmatmul.mubr.bf16.gmra.mrb[0].mxu0 %v369
      %v560 = vpop.f32.mrb[0].mxu0
      %v561 = vadd.f32 0.0, %v560
      %v562 = vpop.f32.mrb[0].mxu0
      %v563 = vpop.f32.mrb[0].mxu0
      %v564 = vadd.f32 0.0, %v563
      %v565 = vpop.f32.mrb[0].mxu0
      %566 = vmatprep.mubr.bf16.mxu0 %v465
      %567 = vmatmul.mubr.bf16.gmra.mrb[0].mxu0 %v371
      %v568 = vpop.f32.mrb[0].mxu0
      %v569 = vadd.f32 0.0, %v568
      %v570 = vpop.f32.mrb[0].mxu0
      %v571 = vpop.f32.mrb[0].mxu0
      %v572 = vadd.f32 0.0, %v571
      %v573 = vpop.f32.mrb[0].mxu0
      %574 = vmatprep.mubr.bf16.mxu0 %v468
      %575 = vmatmul.mubr.bf16.gmra.mrb[0].mxu0 %v373
      %v576 = vpop.f32.mrb[0].mxu0
      %v577 = vadd.f32 0.0, %v576
      %v578 = vpop.f32.mrb[0].mxu0
      %v579 = vpop.f32.mrb[0].mxu0
      %v580 = vadd.f32 0.0, %v579
      %v581 = vpop.f32.mrb[0].mxu0
      %582 = vdwg.mxu0
      %v583 = vadd.f32 %v254, %v505
      %v584 = vadd.f32 %v255, %v508
      %v585 = vadd.f32 %v256, %v513
      %v586 = vadd.f32 %v257, %v516
      %v587 = vadd.f32 %v258, %v521
      %v588 = vadd.f32 %v259, %v524
      %v589 = vadd.f32 %v260, %v529
      %v590 = vadd.f32 %v261, %v532
      %v591 = vadd.f32 %v262, %v537
      %v592 = vadd.f32 %v263, %v540
      %v593 = vadd.f32 %v264, %v545
      %v594 = vadd.f32 %v265, %v548
      %v595 = vadd.f32 %v266, %v553
      %v596 = vadd.f32 %v267, %v556
      %v597 = vadd.f32 %v268, %v561
      %v598 = vadd.f32 %v269, %v564
      %v599 = vadd.f32 %v270, %v569
      %v600 = vadd.f32 %v271, %v572
      %v601 = vadd.f32 %v272, %v577
      %v602 = vadd.f32 %v273, %v580
      %603 = vst [vmem:[#allocation2] sm:$0xff] %v583
      %604 = vst [vmem:[#allocation2 + $0x8] sm:$0xff] %v584
      %605 = vst [vmem:[#allocation2 + $0x10] sm:$0xff] %v585
      %606 = vst [vmem:[#allocation2 + $0x18] sm:$0xff] %v586
      %607 = vst [vmem:[#allocation2 + $0x20] sm:$0xff] %v587
      %608 = vst [vmem:[#allocation2 + $0x28] sm:$0xff] %v588
      %609 = vst [vmem:[#allocation2 + $0x30] sm:$0xff] %v589
      %610 = vst [vmem:[#allocation2 + $0x38] sm:$0xff] %v590
      %611 = vst [vmem:[#allocation2 + $0x40] sm:$0xff] %v591
      %612 = vst [vmem:[#allocation2 + $0x48] sm:$0xff] %v592
      %613 = vst [vmem:[#allocation2 + $0x50] sm:$0xff] %v593
      %614 = vst [vmem:[#allocation2 + $0x58] sm:$0xff] %v594
      %615 = vst [vmem:[#allocation2 + $0x60] sm:$0xff] %v595
      %616 = vst [vmem:[#allocation2 + $0x68] sm:$0xff] %v596
      %617 = vst [vmem:[#allocation2 + $0x70] sm:$0xff] %v597
      %618 = vst [vmem:[#allocation2 + $0x78] sm:$0xff] %v598
      %619 = vst [vmem:[#allocation2 + $0x80] sm:$0xff] %v599
      %620 = vst [vmem:[#allocation2 + $0x88] sm:$0xff] %v600
      %621 = vst [vmem:[#allocation2 + $0x90] sm:$0xff] %v601
      %622 = vst [vmem:[#allocation2 + $0x98] sm:$0xff] %v602
      %p623 = scmp.eq.s32.totalorder %s21, 8
      // Predicated region
      $region37: #{conv_clamp.1} parent=31 // pred_check
        %p624 = pneg %p623
      $region38: #{conv_clamp.1} parent=31 // pred_check_branch
        %626 = sbr.rel (%p624) target = $region40
      $region39: #{conv_clamp.1} parent=31 // pred_region
        %v627 = vld [vmem:[#allocation2] sm:$0xff]
        %v628 = vld [vmem:[#allocation2 + $0x8] sm:$0xff]
        %v629 = vld [vmem:[#allocation2 + $0x10] sm:$0xff]
        %v630 = vld [vmem:[#allocation2 + $0x18] sm:$0xff]
        %v631 = vld [vmem:[#allocation2 + $0x20] sm:$0xff]
        %v632 = vld [vmem:[#allocation2 + $0x28] sm:$0xff]
        %v633 = vld [vmem:[#allocation2 + $0x30] sm:$0xff]
        %v634 = vld [vmem:[#allocation2 + $0x38] sm:$0xff]
        %v635 = vld [vmem:[#allocation2 + $0x40] sm:$0xff]
        %v636 = vld [vmem:[#allocation2 + $0x48] sm:$0xff]
        %v637 = vld [vmem:[#allocation2 + $0x50] sm:$0xff]
        %v638 = vld [vmem:[#allocation2 + $0x58] sm:$0xff]
        %v639 = vld [vmem:[#allocation2 + $0x60] sm:$0xff]
        %v640 = vld [vmem:[#allocation2 + $0x68] sm:$0xff]
        %v641 = vld [vmem:[#allocation2 + $0x70] sm:$0xff]
        %v642 = vld [vmem:[#allocation2 + $0x78] sm:$0xff]
        %v643 = vld [vmem:[#allocation2 + $0x80] sm:$0xff]
        %v644 = vld [vmem:[#allocation2 + $0x88] sm:$0xff]
        %v645 = vld [vmem:[#allocation2 + $0x90] sm:$0xff]
        %v646 = vld [vmem:[#allocation2 + $0x98] sm:$0xff]
        %v647 = vld [vmem:[%s2] sm:$0x1]
        %v649 = vlaneseq
        %v650 = vshrl.u32 %v649, 7
        %v651 = vsub.s32 0, %v650
        %v652 = vrot.slane %v647, %v651
        %v654 = vadd.f32 %v627, %v652
        %v655 = vadd.f32 %v628, %v652
        %v656 = vadd.f32 %v629, %v652
        %v657 = vadd.f32 %v630, %v652
        %v658 = vadd.f32 %v631, %v652
        %v659 = vadd.f32 %v632, %v652
        %v660 = vadd.f32 %v633, %v652
        %v661 = vadd.f32 %v634, %v652
        %v662 = vadd.f32 %v635, %v652
        %v663 = vadd.f32 %v636, %v652
        %v664 = vadd.f32 %v637, %v652
        %v665 = vadd.f32 %v638, %v652
        %v666 = vadd.f32 %v639, %v652
        %v667 = vadd.f32 %v640, %v652
        %v668 = vadd.f32 %v641, %v652
        %v669 = vadd.f32 %v642, %v652
        %v670 = vadd.f32 %v643, %v652
        %v671 = vadd.f32 %v644, %v652
        %v672 = vadd.f32 %v645, %v652
        %v673 = vadd.f32 %v646, %v652
        %v674 = vmax.f32 %v654, 0.2
        %v675 = vmax.f32 %v655, 0.2
        %v676 = vmax.f32 %v656, 0.2
        %v677 = vmax.f32 %v657, 0.2
        %v678 = vmax.f32 %v658, 0.2
        %v679 = vmax.f32 %v659, 0.2
        %v680 = vmax.f32 %v660, 0.2
        %v681 = vmax.f32 %v661, 0.2
        %v682 = vmax.f32 %v662, 0.2
        %v683 = vmax.f32 %v663, 0.2
        %v684 = vmax.f32 %v664, 0.2
        %v685 = vmax.f32 %v665, 0.2
        %v686 = vmax.f32 %v666, 0.2
        %v687 = vmax.f32 %v667, 0.2
        %v688 = vmax.f32 %v668, 0.2
        %v689 = vmax.f32 %v669, 0.2
        %v690 = vmax.f32 %v670, 0.2
        %v691 = vmax.f32 %v671, 0.2
        %v692 = vmax.f32 %v672, 0.2
        %v693 = vmax.f32 %v673, 0.2
        %v694 = vmin.f32 %v674, 0.9
        %v695 = vmin.f32 %v675, 0.9
        %v696 = vmin.f32 %v676, 0.9
        %v697 = vmin.f32 %v677, 0.9
        %v698 = vmin.f32 %v678, 0.9
        %v699 = vmin.f32 %v679, 0.9
        %v700 = vmin.f32 %v680, 0.9
        %v701 = vmin.f32 %v681, 0.9
        %v702 = vmin.f32 %v682, 0.9
        %v703 = vmin.f32 %v683, 0.9
        %v704 = vmin.f32 %v684, 0.9
        %v705 = vmin.f32 %v685, 0.9
        %v706 = vmin.f32 %v686, 0.9
        %v707 = vmin.f32 %v687, 0.9
        %v708 = vmin.f32 %v688, 0.9
        %v709 = vmin.f32 %v689, 0.9
        %v710 = vmin.f32 %v690, 0.9
        %v711 = vmin.f32 %v691, 0.9
        %v712 = vmin.f32 %v692, 0.9
        %v713 = vmin.f32 %v693, 0.9
        %714 = vst [vmem:[%s199] sm:$0xff] %v694
        %715 = vst [vmem:[%s199 + $0x8] sm:$0xff] %v695
        %716 = vst [vmem:[%s199 + $0x10] sm:$0xff] %v696
        %717 = vst [vmem:[%s199 + $0x18] sm:$0xff] %v697
        %718 = vst [vmem:[%s199 + $0x20] sm:$0xff] %v698
        %719 = vst [vmem:[%s199 + $0x28] sm:$0xff] %v699
        %720 = vst [vmem:[%s199 + $0x30] sm:$0xff] %v700
        %721 = vst [vmem:[%s199 + $0x38] sm:$0xff] %v701
        %722 = vst [vmem:[%s199 + $0x40] sm:$0xff] %v702
        %723 = vst [vmem:[%s199 + $0x48] sm:$0xff] %v703
        %724 = vst [vmem:[%s199 + $0x50] sm:$0xff] %v704
        %725 = vst [vmem:[%s199 + $0x58] sm:$0xff] %v705
        %726 = vst [vmem:[%s199 + $0x60] sm:$0xff] %v706
        %727 = vst [vmem:[%s199 + $0x68] sm:$0xff] %v707
        %728 = vst [vmem:[%s199 + $0x70] sm:$0xff] %v708
        %729 = vst [vmem:[%s199 + $0x78] sm:$0xff] %v709
        %730 = vst [vmem:[%s199 + $0x80] sm:$0xff] %v710
        %731 = vst [vmem:[%s199 + $0x88] sm:$0xff] %v711
        %732 = vst [vmem:[%s199 + $0x90] sm:$0xff] %v712
        %733 = vst [vmem:[%s199 + $0x98] sm:$0xff] %v713
      $region40: #{conv_clamp.1} parent=31 // pred_fallthru
        _
      %s734 = smul.u32 20, %s20
      %p735 = scmp.lt.s32.totalorder %s19, 1
      %s736 = scalar_select %p735, %s19, 1
      %p737 = scmp.lt.s32.totalorder %s734, 19
      %s738 = scalar_select %p737, %s734, 19
      %s739 = smul.addr %s736, 20
      %s740 = sadd.s32 %s738, %s739
      %s741 = smul.addr %s740, 8
      %s742 = scalar_lea.vmem %s3, %s741
      // Predicated region
      $region41: #{conv_clamp.1} parent=31 // pred_check
        %p743 = pneg %p121
      $region42: #{conv_clamp.1} parent=31 // pred_check_branch
        %745 = sbr.rel (%p743) target = $region44
      $region43: #{conv_clamp.1} parent=31 // pred_region
        %s746 = smul.u32 20, %s20
      $region44: #{conv_clamp.1} parent=31 // pred_fallthru
        _
    $region32: #{conv_clamp.1} parent=5 // pred_fallthru
      _
    %p747 = scmp.le.s32.totalorder 2, %s9
    // Predicated region
    $region45: #{conv_clamp.1} parent=5 // pred_check
      %p748 = pneg %p747
    $region46: #{conv_clamp.1} parent=5 // pred_check_branch
      %750 = sbr.rel (%p748) target = $region48
    $region47: #{conv_clamp.1} parent=5 // pred_region
      %s751 = ssub.s32 %s9, 2
      // Predicated region
      $region49: #{conv_clamp.1} parent=47 // pred_check
        %p752 = pneg %p127
      $region50: #{conv_clamp.1} parent=47 // pred_check_branch
        %754 = sbr.rel (%p752) target = $region52
      $region51: #{conv_clamp.1} parent=47 // pred_region
        %s755 = smul.u32 20, %s23
        %p756 = scmp.lt.s32.totalorder %s22, 1
        %s757 = scalar_select %p756, %s22, 1
        %p758 = scmp.lt.s32.totalorder %s755, 19
        %s759 = scalar_select %p758, %s755, 19
        %s760 = smul.addr %s757, 20
        %s761 = sadd.s32 %s759, %s760
        %s762 = smul.addr %s761, 8
        %s763 = scalar_lea.vmem %s3, %s762
      $region52: #{conv_clamp.1} parent=47 // pred_fallthru
        _
    $region48: #{conv_clamp.1} parent=5 // pred_fallthru
      _
  $region6: #{conv_clamp.1} parent=0 // loop_footer
    %s13 = sadd.s32 1, %s9
  $region7: #{conv_clamp.1} parent=0 // loop_footer_branch
    %8 = sbr.rel target = $region3
  $region8: #{conv_clamp.1} parent=0 // loop_exit
    _

</llo_original>
